<compile_context>
chip_gen: v7x
topology: tpu7x:2x2x1
jax: 0.10.0
libtpu: 0.0.40
codegen_flags: <defaults>
</compile_context>

<pallas_src>
import jax
import jax.numpy as jnp
from jax.experimental import pallas as pl
from jax.experimental.pallas import tpu as pltpu


# --------------------------------------------------------------------------
# helpers
# --------------------------------------------------------------------------
def _round_up(v, m):
    return ((v + m - 1) // m) * m


def _vmem_limit_bytes():
    """Chip-aware scoped-VMEM limit.

    v7x has 64 MiB VMEM per TensorCore -> keep ~44 MiB (headroom for Mosaic
    internal scratch); v5e/v6e have 128 MiB -> allow ~96 MiB.
    """
    cap = 128 << 20
    try:
        cap = int(pltpu.get_tpu_info().vmem_capacity_bytes)
    except Exception:
        pass
    if cap <= (64 << 20) + (1 << 20):
        return 44 << 20
    return 96 << 20


def _const_spec(shape):
    """BlockSpec for a grid-invariant (weight/bias) input.

    Single-buffered when the installed Pallas supports pipeline_mode;
    returns (spec, buffer_factor) for VMEM accounting.
    """
    ndim = len(shape)
    idx = lambda i: (0,) * ndim
    try:
        return pl.BlockSpec(shape, idx, pipeline_mode=pl.Buffered(1)), 1
    except TypeError:
        return pl.BlockSpec(shape, idx), 2


# --------------------------------------------------------------------------
# Fused SkipConnection(FeedForward): y = x + relu(x @ W1 + b1) @ W2 + b2
# --------------------------------------------------------------------------
def _skip_ff_kernel(x_ref, w1_ref, b1_ref, w2_ref, b2_ref, o_ref):
    x = x_ref[...]                                        # (tm, E), input dtype
    # MXU operands in the weight dtype (bf16 on v6e/v7x if caller opted in),
    # accumulation always f32.
    h = jnp.dot(x.astype(w1_ref.dtype), w1_ref[...],
                preferred_element_type=jnp.float32)
    h = jnp.maximum(h + b1_ref[...], 0.0).astype(w2_ref.dtype)
    y = jnp.dot(h, w2_ref[...], preferred_element_type=jnp.float32)
    # f32 epilogue: bias + residual (x read once from HBM, never re-fetched)
    y = y + b2_ref[...] + x.astype(jnp.float32)
    o_ref[...] = y.astype(o_ref.dtype)


def skip_connection_ff(x, w1, b1, w2, b2, *, tile_rows=None, mxu_dtype=None,
                       min_rows_for_pallas=512, force_pallas=False):
    """x: (..., E); w1: (E, H); b1: (H,); w2: (H, E); b2: (E,).

    mxu_dtype: optionally cast matmul operands (x tiles and weights), e.g.
    jnp.bfloat16 on v6e/v7x; accumulation/bias/ReLU/residual stay f32.
    """
    E = x.shape[-1]
    H = w1.shape[1]
    N = x.size // E

    # Tiny calls are launch/latency bound — let XLA fuse them.
    if not force_pallas and N < min_rows_for_pallas:
        h = jnp.maximum(jnp.dot(x, w1) + b1, 0.0)
        return x + jnp.dot(h, w2) + b2

    if mxu_dtype is not None:
        w1 = w1.astype(mxu_dtype)
        w2 = w2.astype(mxu_dtype)

    xf = x.reshape(N, E)
    x_isz = jnp.dtype(x.dtype).itemsize
    w_isz = jnp.dtype(w1.dtype).itemsize

    # Grid-invariant blocks: single-buffered where supported.
    w1_spec, f1 = _const_spec((E, H))
    b1_spec, _ = _const_spec((1, H))
    w2_spec, f2 = _const_spec((H, E))
    b2_spec, _ = _const_spec((1, E))
    buf_factor = max(f1, f2)
    weight_bytes = buf_factor * (2 * E * H * w_isz + (H + E) * 4)

    vmem_limit = _vmem_limit_bytes()
    if tile_rows is None:
        per_row = (4 * E * x_isz                              # x + y tiles, 2-deep
                   + E * 4                                    # f32 x (residual)
                   + (E * w_isz if w1.dtype != x.dtype else 0)   # mxu-dtype x copy
                   + H * 4                                    # f32 h
                   + (H * w_isz if w1.dtype != jnp.float32 else 0)  # h downcast
                   + E * 4)                                   # f32 accumulator
        budget = max(vmem_limit - weight_bytes - (4 << 20), 1 << 20)
        tile_rows = int(budget // (per_row * 5 // 4))         # 1.25x safety
        tile_rows = max(8, min(tile_rows, 4096))
        tile_rows = (tile_rows // 8) * 8
    # >= 2 grid steps so v7x can shard the parallel axis over both TCs;
    # never exceed the sublane-rounded row count.
    tile_rows = min(tile_rows, max(8, _round_up(pl.cdiv(N, 2), 8)))
    tile_rows = min(tile_rows, max(8, _round_up(N, 8)))

    grid = (pl.cdiv(N, tile_rows),)            # edge tile handled by masked stores

    b1r = b1.reshape(1, H).astype(jnp.float32)
    b2r = b2.reshape(1, E).astype(jnp.float32)

    y = pl.pallas_call(
        _skip_ff_kernel,
        out_shape=jax.ShapeDtypeStruct((N, E), x.dtype),
        grid_spec=pltpu.PrefetchScalarGridSpec(
            num_scalar_prefetch=0,
            grid=grid,
            in_specs=[
                pl.BlockSpec((tile_rows, E), lambda i: (i, 0)),
                w1_spec, b1_spec, w2_spec, b2_spec,
            ],
            out_specs=pl.BlockSpec((tile_rows, E), lambda i: (i, 0)),
        ),
        compiler_params=pltpu.CompilerParams(
            dimension_semantics=("parallel",),
            vmem_limit_bytes=int(vmem_limit)),
    )(xf, w1, b1r, w2, b2r)
    return y.reshape(x.shape)


# --------------------------------------------------------------------------
# Generic SkipConnection residual add: y = x + module(x), module(x) precomputed
# (fallback only — prefer fusing the add into the producer kernel's epilogue)
# --------------------------------------------------------------------------
def _skip_add_kernel(x_ref, fx_ref, o_ref):
    o_ref[...] = x_ref[...] + fx_ref[...]


def skip_connection_add(x, fx, *, tile_rows=None, min_rows_for_pallas=512,
                        force_pallas=False):
    assert x.shape == fx.shape and x.dtype == fx.dtype
    orig_shape = x.shape
    T = x.size

    # Lane-dense slab: widest last dim that is a multiple of 128 (full-width
    # vst, never masked vst.msk). Pad non-multiple-of-128 sizes.
    pad = 0
    Tw = T
    if T % 128 != 0:
        Tw = _round_up(T, 1024)
        pad = Tw - T
    lanes = None
    for cand in (4096, 2048, 1024, 512, 256, 128):
        if Tw % cand == 0 and Tw // cand >= 8:
            lanes = cand
            break
    if lanes is None:                           # tiny array: widest divisor
        for cand in (4096, 2048, 1024, 512, 256, 128):
            if Tw % cand == 0:
                lanes = cand
                break
    rows = Tw // lanes

    if not force_pallas and rows < min_rows_for_pallas:
        return x + fx                            # latency-bound: let XLA fuse

    xf = x.reshape(-1)
    ff = fx.reshape(-1)
    if pad:
        xf = jnp.pad(xf, (0, pad))
        ff = jnp.pad(ff, (0, pad))
    x2 = xf.reshape(rows, lanes)
    f2 = ff.reshape(rows, lanes)

    itemsize = jnp.dtype(x.dtype).itemsize
    vmem_limit = _vmem_limit_bytes()
    if tile_rows is None:
        per_row = 6 * lanes * itemsize           # 2 ins + 1 out, double-buffered
        budget = max(vmem_limit - (4 << 20), 1 << 20)
        tile_rows = int(budget // (per_row * 5 // 4))
        tile_rows = max(8, min(tile_rows, 4096))
        tile_rows = (tile_rows // 8) * 8
    tile_rows = min(tile_rows, max(8, _round_up(pl.cdiv(rows, 2), 8)))
    tile_rows = min(tile_rows, max(8, _round_up(rows, 8)))

    grid = (pl.cdiv(rows, tile_rows),)

    y = pl.pallas_call(
        _skip_add_kernel,
        out_shape=jax.ShapeDtypeStruct((rows, lanes), x.dtype),
        grid_spec=pltpu.PrefetchScalarGridSpec(
            num_scalar_prefetch=0,
            grid=grid,
            in_specs=[pl.BlockSpec((tile_rows, lanes), lambda i: (i, 0)),
                      pl.BlockSpec((tile_rows, lanes), lambda i: (i, 0))],
            out_specs=pl.BlockSpec((tile_rows, lanes), lambda i: (i, 0)),
        ),
        compiler_params=pltpu.CompilerParams(
            dimension_semantics=("parallel",),
            vmem_limit_bytes=int(vmem_limit)),
    )(x2, f2)
    y = y.reshape(-1)
    if pad:
        y = y[:T]
    return y.reshape(orig_shape)


# --------------------------------------------------------------------------
# plain-JAX references for verification
# --------------------------------------------------------------------------
def _ref_ff(x, w1, b1, w2, b2):
    h = jnp.maximum(x @ w1 + b1, 0.0)
    return h @ w2 + b2


def _ref_skip_ff(x, w1, b1, w2, b2):
    return x + _ref_ff(x, w1, b1, w2, b2)


if __name__ == "__main__":
    key = jax.random.PRNGKey(0)
    # metabbo-style sizes: batch=2, seq=8, embed_dim=128, ff_hidden=256
    B, S, E, H = 2, 8, 128, 256
    kx, k1, k2, k3, k4, kx2 = jax.random.split(key, 6)
    x = jax.random.normal(kx, (B, S, E), dtype=jnp.float32)
    w1 = jax.random.normal(k1, (E, H), dtype=jnp.float32) / jnp.sqrt(float(E))
    b1 = 0.01 * jax.random.normal(k2, (H,), dtype=jnp.float32)
    w2 = jax.random.normal(k3, (H, E), dtype=jnp.float32) / jnp.sqrt(float(H))
    b2 = 0.01 * jax.random.normal(k4, (E,), dtype=jnp.float32)

    # 1) fused SkipConnection(feed_forward), small metabbo shape (Pallas forced)
    y = jax.block_until_ready(
        skip_connection_ff(x, w1, b1, w2, b2, force_pallas=True))
    y_ref = _ref_skip_ff(x, w1, b1, w2, b2)
    assert jnp.allclose(y, y_ref, atol=1e-4, rtol=1e-4), "fused skip-FF mismatch"

    # 2) larger batch of rows (multi-step row grid, default dispatch)
    xb = jax.random.normal(kx2, (8, 128, E), dtype=jnp.float32)
    yb = jax.block_until_ready(skip_connection_ff(xb, w1, b1, w2, b2))
    yb_ref = _ref_skip_ff(xb, w1, b1, w2, b2)
    assert jnp.allclose(yb, yb_ref, atol=1e-4, rtol=1e-4), "large skip-FF mismatch"

    # 3) bf16 MXU operands (v6e/v7x native path), f32 accumulation/epilogue
    yb16 = jax.block_until_ready(
        skip_connection_ff(xb, w1, b1, w2, b2, mxu_dtype=jnp.bfloat16))
    assert jnp.allclose(yb16, yb_ref, atol=5e-2, rtol=5e-2), "bf16 skip-FF mismatch"

    # 4) generic SkipConnection around an opaque inner module's output
    fx = _ref_ff(x, w1, b1, w2, b2)
    y2 = jax.block_until_ready(skip_connection_add(x, fx, force_pallas=True))
    assert jnp.allclose(y2, x + fx, atol=1e-6, rtol=1e-6), "residual add mismatch"

    # 5) generic add with a non-multiple-of-128 trailing dim (padded slab path)
    xo = jax.random.normal(kx, (2, 8, 97), dtype=jnp.float32)
    fo = jnp.tanh(xo)
    y3 = jax.block_until_ready(skip_connection_add(xo, fo, force_pallas=True))
    assert jnp.allclose(y3, xo + fo, atol=1e-6, rtol=1e-6), "padded add mismatch"

    print("KERNEL_OK")
</pallas_src>

<mosaic_0001>
module attributes {stable_mosaic.version = 11 : i64} {
  func.func @_skip_ff_kernel(%arg0: i32, %arg1: memref<8x128xf32, #tpu.memory_space<vmem>>, %arg2: memref<128x256xf32, #tpu.memory_space<vmem>>, %arg3: memref<1x256xf32, #tpu.memory_space<vmem>>, %arg4: memref<256x128xf32, #tpu.memory_space<vmem>>, %arg5: memref<1x128xf32, #tpu.memory_space<vmem>>, %arg6: memref<8x128xf32, #tpu.memory_space<vmem>>) attributes {dimension_semantics = [#tpu.dimension_semantics<parallel>], iteration_bounds = array<i64: 2>, scalar_prefetch = 0 : i64, scratch_operands = 0 : i64, tpu.core_type = #tpu.core_type<tc>, window_params = [{transform_indices = @transform_0, window_bounds = array<i64: 8, 128>}, {pipeline_mode = #tpu.pipeline_mode<synchronous>, transform_indices = @transform_1, window_bounds = array<i64: 128, 256>}, {pipeline_mode = #tpu.pipeline_mode<synchronous>, transform_indices = @transform_2, window_bounds = array<i64: 1, 256>}, {pipeline_mode = #tpu.pipeline_mode<synchronous>, transform_indices = @transform_3, window_bounds = array<i64: 256, 128>}, {pipeline_mode = #tpu.pipeline_mode<synchronous>, transform_indices = @transform_4, window_bounds = array<i64: 1, 128>}, {transform_indices = @transform_5, window_bounds = array<i64: 8, 128>}]} {
    %c0 = arith.constant 0 : index
    %c0_0 = arith.constant 0 : index
    %0 = vector.load %arg1[%c0, %c0_0] : memref<8x128xf32, #tpu.memory_space<vmem>>, vector<8x128xf32>
    %c0_1 = arith.constant 0 : index
    %c0_2 = arith.constant 0 : index
    %1 = vector.load %arg2[%c0_1, %c0_2] : memref<128x256xf32, #tpu.memory_space<vmem>>, vector<128x256xf32>
    %cst = arith.constant dense<0.000000e+00> : vector<8x256xf32>
    %2 = tpu.matmul %0, %1, %cst {dimension_numbers = #tpu.dot_dimension_numbers<[1], [0], [0], [1], [0, 0, 1, 1], [], []>} : vector<8x128xf32>, vector<128x256xf32>, vector<8x256xf32> -> vector<8x256xf32>
    %c0_3 = arith.constant 0 : index
    %c0_4 = arith.constant 0 : index
    %3 = vector.load %arg3[%c0_3, %c0_4] : memref<1x256xf32, #tpu.memory_space<vmem>>, vector<1x256xf32>
    %4 = vector.broadcast %3 : vector<1x256xf32> to vector<8x256xf32>
    %5 = arith.addf %2, %4 : vector<8x256xf32>
    %cst_5 = arith.constant 0.000000e+00 : f32
    %6 = vector.broadcast %cst_5 : f32 to vector<8x256xf32>
    %7 = arith.maximumf %5, %6 : vector<8x256xf32>
    %c0_6 = arith.constant 0 : index
    %c0_7 = arith.constant 0 : index
    %8 = vector.load %arg4[%c0_6, %c0_7] : memref<256x128xf32, #tpu.memory_space<vmem>>, vector<256x128xf32>
    %cst_8 = arith.constant dense<0.000000e+00> : vector<8x128xf32>
    %9 = tpu.matmul %7, %8, %cst_8 {dimension_numbers = #tpu.dot_dimension_numbers<[1], [0], [0], [1], [0, 0, 1, 1], [], []>} : vector<8x256xf32>, vector<256x128xf32>, vector<8x128xf32> -> vector<8x128xf32>
    %c0_9 = arith.constant 0 : index
    %c0_10 = arith.constant 0 : index
    %10 = vector.load %arg5[%c0_9, %c0_10] : memref<1x128xf32, #tpu.memory_space<vmem>>, vector<1x128xf32>
    %11 = vector.broadcast %10 : vector<1x128xf32> to vector<8x128xf32>
    %12 = arith.addf %9, %11 : vector<8x128xf32>
    %13 = arith.addf %12, %0 : vector<8x128xf32>
    %c0_11 = arith.constant 0 : index
    %c0_12 = arith.constant 0 : index
    %14 = vector.load %arg6[%c0_11, %c0_12] : memref<8x128xf32, #tpu.memory_space<vmem>>, vector<8x128xf32>
    tpu.vector_store %arg6[%c0_11, %c0_12], %13 {strides = array<i32>} : memref<8x128xf32, #tpu.memory_space<vmem>>, vector<8x128xf32>,
    return
  }
  func.func @transform_0(%arg0: i32) -> (i32, i32) {
    %c0_i32 = arith.constant 0 : i32
    %c0_i32_0 = arith.constant 0 : i32
    return %arg0, %c0_i32 : i32, i32
  }
  func.func @transform_1(%arg0: i32) -> (i32, i32) {
    %c0_i32 = arith.constant 0 : i32
    %c0_i32_0 = arith.constant 0 : i32
    %c0_i32_1 = arith.constant 0 : i32
    return %c0_i32, %c0_i32_0 : i32, i32
  }
  func.func @transform_2(%arg0: i32) -> (i32, i32) {
    %c0_i32 = arith.constant 0 : i32
    %c0_i32_0 = arith.constant 0 : i32
    %c0_i32_1 = arith.constant 0 : i32
    return %c0_i32, %c0_i32_0 : i32, i32
  }
  func.func @transform_3(%arg0: i32) -> (i32, i32) {
    %c0_i32 = arith.constant 0 : i32
    %c0_i32_0 = arith.constant 0 : i32
    %c0_i32_1 = arith.constant 0 : i32
    return %c0_i32, %c0_i32_0 : i32, i32
  }
  func.func @transform_4(%arg0: i32) -> (i32, i32) {
    %c0_i32 = arith.constant 0 : i32
    %c0_i32_0 = arith.constant 0 : i32
    %c0_i32_1 = arith.constant 0 : i32
    return %c0_i32, %c0_i32_0 : i32, i32
  }
  func.func @transform_5(%arg0: i32) -> (i32, i32) {
    %c0_i32 = arith.constant 0 : i32
    %c0_i32_0 = arith.constant 0 : i32
    return %arg0, %c0_i32 : i32, i32
  }
}

</mosaic_0001>

<llo_original>
// kernel: tpu_custom_call.1
$region0: #{tpu_custom_call.1}
  #allocation0 [shape = 'u32[]', space=smem, size = 0x4, offset = 0x4, fixed_abs, tag = 'smem constant byte address 0x4 - core index']
  #allocation1 [shape = 'u32[144,128]{1,0:T(1,128)}', space=vmem, size = 0x12000, scoped, tag = 'internal scratch']
  %s0 = inlined_call_operand.hbm [shape: f32[16,128], index: 0, kind: input, shape index: {}]
  %s1 = inlined_call_operand.hbm [shape: f32[128,256], index: 1, kind: input, shape index: {}]
  %s2 = inlined_call_operand.hbm [shape: f32[1,256], index: 2, kind: input, shape index: {}]
  %s3 = inlined_call_operand.hbm [shape: f32[256,128], index: 3, kind: input, shape index: {}]
  %s4 = inlined_call_operand.hbm [shape: f32[1,128], index: 4, kind: input, shape index: {}]
  %s5 = inlined_call_operand.hbm [shape: f32[16,128], index: 5, kind: output, shape index: {}]
  %s6 = sld [smem:[#allocation0]]
  $region73: #{tpu_custom_call.1} parent=0
    _
  %s8 = ssub.s32 1, %s6
  %s9 = scalar_select 0, %s8, %s6
  $region1: #{tpu_custom_call.1} parent=0
    #allocation2 [shape = 'u8[8192]{0}', space=vmem, size = 0x2000, scoped, tag = 'input window, operand 0']
    #allocation3 [shape = 's32[2]{0}', space=sflag, size = 0x8, scoped, tag = 'scoped memory for tpu_custom_call.1']
    #allocation4 [shape = 's32[2]{0}', space=sflag, size = 0x8, scoped, tag = 'scoped memory for tpu_custom_call.1']
    #allocation5 [shape = 'u8[131072]{0}', space=vmem, size = 0x20000, scoped, tag = 'input window, operand 1, single buffered']
    #allocation6 [shape = 's32[1]{0}', space=sflag, size = 0x4, scoped, tag = 'scoped memory for tpu_custom_call.1']
    #allocation7 [shape = 'u8[1024]{0}', space=vmem, size = 0x400, scoped, tag = 'input window, operand 2, single buffered']
    #allocation8 [shape = 'u8[131072]{0}', space=vmem, size = 0x20000, scoped, tag = 'input window, operand 3, single buffered']
    #allocation9 [shape = 's32[1]{0}', space=sflag, size = 0x4, scoped, tag = 'scoped memory for tpu_custom_call.1']
    #allocation10 [shape = 'u8[512]{0}', space=vmem, size = 0x400, scoped, tag = 'input window, operand 4, single buffered']
    #allocation11 [shape = 'u8[8192]{0}', space=vmem, size = 0x2000, scoped, tag = 'output window, operand 0']
    %10 = vsyncpa [#allocation3], 0
    %s11 = scalar_lea.sflag [#allocation3], 1
    %12 = vsyncpa %s11, 0
    %13 = vsyncpa [#allocation6], 0
    %14 = vsyncpa [#allocation9], 0
    %15 = vsyncpa [#allocation4], 0
    %s16 = scalar_lea.sflag [#allocation4], 1
    %17 = vsyncpa %s16, 0
    loop: start=0, step=1, limit=4
    $region2: #{tpu_custom_call.1} parent=1 // loop_pre_header
      _
    $region3: #{tpu_custom_call.1} parent=1 // loop_header
      %s19 = sphi 0, %s23
      %p20 = scmp.ge.s32.totalorder %s19, 4
      %s29 = sphi 0, %s31
      %s32 = sphi 0, %s29
      %s33 = sphi 0, %s32
      %s49 = sphi 0, %s33
      %s53 = sphi 0, %s53
      %s55 = sphi 0, %s53
      %s56 = sphi 0, %s55
      %s70 = sphi 0, %s56
      %s74 = sphi 0, %s74
      %s76 = sphi 0, %s74
      %s77 = sphi 0, %s76
      %s91 = sphi 0, %s77
      %s95 = sphi 0, %s95
      %s97 = sphi 0, %s95
      %s98 = sphi 0, %s97
      %s112 = sphi 0, %s98
      %s116 = sphi 0, %s116
      %s118 = sphi 0, %s116
      %s119 = sphi 0, %s118
      %s133 = sphi 0, %s119
      %s139 = sphi 0, %s141
      %s142 = sphi 0, %s139
      %s143 = sphi 0, %s142
      %s159 = sphi 0, %s143
    $region4: #{tpu_custom_call.1} parent=1 // loop_header_branch
      %22 = sbr.rel (%p20) target = $region8
    $region5: #{tpu_custom_call.1} parent=1 // loop_body
      %s24 = ssub.s32 %s19, 1
      %s25 = ssub.s32 %s19, 2
      %s26 = sadd.s32 %s19, 1
      %s27 = ssub.s32 %s19, %s26
      %p28 = scmp.eq.s32.totalorder %s27, 0
      %s30 = sadd.s32 %s29, 1
      %s31 = scalar_select %p28, %s29, %s30
      %p34 = pneg %p28
      %p35 = scmp.eq.s32.totalorder %s19, 1
      %p36 = por %p34, %p35
      %p37 = scmp.ne.s32.totalorder %s29, %s32
      %p38 = scmp.eq.s32.totalorder %s19, 0
      %p39 = por %p37, %p38
      %p40 = scmp.ne.s32.totalorder %s29, %s32
      %p41 = scmp.eq.s32.totalorder %s24, 1
      %p42 = por %p40, %p41
      %p43 = scmp.ne.s32.totalorder %s32, %s33
      %p44 = scmp.eq.s32.totalorder %s24, 0
      %p45 = por %p43, %p44
      %p46 = scmp.ne.s32.totalorder %s32, %s33
      %p47 = scmp.eq.s32.totalorder %s25, 1
      %p48 = por %p46, %p47
      %p50 = scmp.ne.s32.totalorder %s33, %s49
      %p51 = scmp.eq.s32.totalorder %s25, 0
      %p52 = por %p50, %p51
      %s54 = sadd.s32 %s53, 1
      %p57 = scmp.eq.s32.totalorder %s19, 1
      %p58 = scmp.ne.s32.totalorder %s53, %s55
      %p59 = scmp.eq.s32.totalorder %s19, 0
      %p60 = por %p58, %p59
      %p61 = scmp.ne.s32.totalorder %s53, %s55
      %p62 = scmp.eq.s32.totalorder %s24, 1
      %p63 = por %p61, %p62
      %p64 = scmp.ne.s32.totalorder %s55, %s56
      %p65 = scmp.eq.s32.totalorder %s24, 0
      %p66 = por %p64, %p65
      %p67 = scmp.ne.s32.totalorder %s55, %s56
      %p68 = scmp.eq.s32.totalorder %s25, 1
      %p69 = por %p67, %p68
      %p71 = scmp.ne.s32.totalorder %s56, %s70
      %p72 = scmp.eq.s32.totalorder %s25, 0
      %p73 = por %p71, %p72
      %s75 = sadd.s32 %s74, 1
      %p78 = scmp.eq.s32.totalorder %s19, 1
      %p79 = scmp.ne.s32.totalorder %s74, %s76
      %p80 = scmp.eq.s32.totalorder %s19, 0
      %p81 = por %p79, %p80
      %p82 = scmp.ne.s32.totalorder %s74, %s76
      %p83 = scmp.eq.s32.totalorder %s24, 1
      %p84 = por %p82, %p83
      %p85 = scmp.ne.s32.totalorder %s76, %s77
      %p86 = scmp.eq.s32.totalorder %s24, 0
      %p87 = por %p85, %p86
      %p88 = scmp.ne.s32.totalorder %s76, %s77
      %p89 = scmp.eq.s32.totalorder %s25, 1
      %p90 = por %p88, %p89
      %p92 = scmp.ne.s32.totalorder %s77, %s91
      %p93 = scmp.eq.s32.totalorder %s25, 0
      %p94 = por %p92, %p93
      %s96 = sadd.s32 %s95, 1
      %p99 = scmp.eq.s32.totalorder %s19, 1
      %p100 = scmp.ne.s32.totalorder %s95, %s97
      %p101 = scmp.eq.s32.totalorder %s19, 0
      %p102 = por %p100, %p101
      %p103 = scmp.ne.s32.totalorder %s95, %s97
      %p104 = scmp.eq.s32.totalorder %s24, 1
      %p105 = por %p103, %p104
      %p106 = scmp.ne.s32.totalorder %s97, %s98
      %p107 = scmp.eq.s32.totalorder %s24, 0
      %p108 = por %p106, %p107
      %p109 = scmp.ne.s32.totalorder %s97, %s98
      %p110 = scmp.eq.s32.totalorder %s25, 1
      %p111 = por %p109, %p110
      %p113 = scmp.ne.s32.totalorder %s98, %s112
      %p114 = scmp.eq.s32.totalorder %s25, 0
      %p115 = por %p113, %p114
      %s117 = sadd.s32 %s116, 1
      %p120 = scmp.eq.s32.totalorder %s19, 1
      %p121 = scmp.ne.s32.totalorder %s116, %s118
      %p122 = scmp.eq.s32.totalorder %s19, 0
      %p123 = por %p121, %p122
      %p124 = scmp.ne.s32.totalorder %s116, %s118
      %p125 = scmp.eq.s32.totalorder %s24, 1
      %p126 = por %p124, %p125
      %p127 = scmp.ne.s32.totalorder %s118, %s119
      %p128 = scmp.eq.s32.totalorder %s24, 0
      %p129 = por %p127, %p128
      %p130 = scmp.ne.s32.totalorder %s118, %s119
      %p131 = scmp.eq.s32.totalorder %s25, 1
      %p132 = por %p130, %p131
      %p134 = scmp.ne.s32.totalorder %s119, %s133
      %p135 = scmp.eq.s32.totalorder %s25, 0
      %p136 = por %p134, %p135
      %s137 = ssub.s32 %s19, %s26
      %p138 = scmp.eq.s32.totalorder %s137, 0
      %s140 = sadd.s32 %s139, 1
      %s141 = scalar_select %p138, %s139, %s140
      %p144 = pneg %p138
      %p145 = scmp.eq.s32.totalorder %s19, 1
      %p146 = por %p144, %p145
      %p147 = scmp.ne.s32.totalorder %s139, %s142
      %p148 = scmp.eq.s32.totalorder %s19, 0
      %p149 = por %p147, %p148
      %p150 = scmp.ne.s32.totalorder %s139, %s142
      %p151 = scmp.eq.s32.totalorder %s24, 1
      %p152 = por %p150, %p151
      %p153 = scmp.ne.s32.totalorder %s142, %s143
      %p154 = scmp.eq.s32.totalorder %s24, 0
      %p155 = por %p153, %p154
      %p156 = scmp.ne.s32.totalorder %s142, %s143
      %p157 = scmp.eq.s32.totalorder %s25, 1
      %p158 = por %p156, %p157
      %p160 = scmp.ne.s32.totalorder %s143, %s159
      %p161 = scmp.eq.s32.totalorder %s25, 0
      %p162 = por %p160, %p161
      %p163 = scmp.le.s32.totalorder 1, %s19
      %p164 = scmp.lt.s32.totalorder %s19, 3
      %p165 = pnand %p163, %p164
      %p166 = pneg %p165
      // Predicated region
      $region9: #{tpu_custom_call.1} parent=5 // pred_check
        _
      $region10: #{tpu_custom_call.1} parent=5 // pred_check_branch
        %168 = sbr.rel (%p165) target = $region12
      $region11: #{tpu_custom_call.1} parent=5 // pred_region
        %s169 = ssub.s32 %s19, 1
        // Predicated region
        $region13: #{tpu_custom_call.1} parent=11 // pred_check
          %p170 = pneg %p66
        $region14: #{tpu_custom_call.1} parent=11 // pred_check_branch
          %172 = sbr.rel (%p170) target = $region16
        $region15: #{tpu_custom_call.1} parent=11 // pred_region
          %s174 = ssub.s32 4096, 4096
          %175 = vsyncadd [#allocation6], %s174
          %s176 = sshll.u32 [#allocation5], 4
          %s177 = int_to_ptr.vmem [resolvable:$true] %s176
          %182 = dma.hbm_to_vmem [thread:$0]  %s1, 4096, %s177, [#allocation6], 256, 256, 16
        $region16: #{tpu_custom_call.1} parent=11 // pred_fallthru
          _
        // Predicated region
        $region17: #{tpu_custom_call.1} parent=11 // pred_check
          %p183 = pneg %p87
        $region18: #{tpu_custom_call.1} parent=11 // pred_check_branch
          %185 = sbr.rel (%p183) target = $region20
        $region19: #{tpu_custom_call.1} parent=11 // pred_region
          %s187 = ssub.s32 32, 32
          %188 = vsyncadd [#allocation6], %s187
          %s190 = sshll.u32 [#allocation7], 4
          %s191 = int_to_ptr.vmem [resolvable:$true] %s190
          %193 = dma.hbm_to_vmem [thread:$0]  %s2, 32, %s191, [#allocation6]
        $region20: #{tpu_custom_call.1} parent=11 // pred_fallthru
          _
        // Predicated region
        $region21: #{tpu_custom_call.1} parent=11 // pred_check
          %p194 = pneg %p108
        $region22: #{tpu_custom_call.1} parent=11 // pred_check_branch
          %196 = sbr.rel (%p194) target = $region24
        $region23: #{tpu_custom_call.1} parent=11 // pred_region
          %s198 = ssub.s32 4096, 4096
          %199 = vsyncadd [#allocation9], %s198
          %s200 = sshll.u32 [#allocation8], 4
          %s201 = int_to_ptr.vmem [resolvable:$true] %s200
          %206 = dma.hbm_to_vmem [thread:$0]  %s3, 4096, %s201, [#allocation9], 128, 128, 8
        $region24: #{tpu_custom_call.1} parent=11 // pred_fallthru
          _
        // Predicated region
        $region25: #{tpu_custom_call.1} parent=11 // pred_check
          %p207 = pneg %p129
        $region26: #{tpu_custom_call.1} parent=11 // pred_check_branch
          %209 = sbr.rel (%p207) target = $region28
        $region27: #{tpu_custom_call.1} parent=11 // pred_region
          %s211 = ssub.s32 16, 16
          %212 = vsyncadd [#allocation9], %s211
          %s214 = sshll.u32 [#allocation10], 4
          %s215 = int_to_ptr.vmem [resolvable:$true] %s214
          %217 = dma.hbm_to_vmem [thread:$0]  %s4, 16, %s215, [#allocation9]
        $region28: #{tpu_custom_call.1} parent=11 // pred_fallthru
          _
      $region12: #{tpu_custom_call.1} parent=5 // pred_fallthru
        _
      %p218 = scmp.lt.s32.totalorder %s19, 2
      // Predicated region
      $region29: #{tpu_custom_call.1} parent=5 // pred_check
        %p219 = pneg %p218
      $region30: #{tpu_custom_call.1} parent=5 // pred_check_branch
        %221 = sbr.rel (%p219) target = $region32
      $region31: #{tpu_custom_call.1} parent=5 // pred_region
        // Predicated region
        $region33: #{tpu_custom_call.1} parent=31 // pred_check
          %p222 = pneg %p39
        $region34: #{tpu_custom_call.1} parent=31 // pred_check_branch
          %224 = sbr.rel (%p222) target = $region36
        $region35: #{tpu_custom_call.1} parent=31 // pred_region
          %s225 = sand.u32 %s29, 1
          %s226 = scalar_lea.sflag [#allocation3], %s225
          %s227 = sand.u32 %s29, 1
          %s228 = smul.addr %s227, 8
          %s229 = scalar_lea.vmem [#allocation2], %s228
          %s231 = ssub.s32 128, 128
          %232 = vsyncadd %s226, %s231
          %s233 = smul.addr %s19, 128
          %s234 = scalar_lea.hbm %s0, %s233
          %s236 = sshll.u32 %s229, 4
          %s237 = int_to_ptr.vmem [resolvable:$true] %s236
          %239 = dma.hbm_to_vmem [thread:$0]  %s234, 128, %s237, %s226
        $region36: #{tpu_custom_call.1} parent=31 // pred_fallthru
          _
      $region32: #{tpu_custom_call.1} parent=5 // pred_fallthru
        _
      %p240 = scmp.le.s32.totalorder 1, %s19
      %p241 = scmp.lt.s32.totalorder %s19, 3
      %p242 = pnand %p240, %p241
      %p243 = pneg %p242
      // Predicated region
      $region37: #{tpu_custom_call.1} parent=5 // pred_check
        _
      $region38: #{tpu_custom_call.1} parent=5 // pred_check_branch
        %245 = sbr.rel (%p242) target = $region40
      $region39: #{tpu_custom_call.1} parent=5 // pred_region
        %s246 = ssub.s32 %s19, 1
        %s247 = sand.u32 %s32, 1
        %s248 = scalar_lea.sflag [#allocation3], %s247
        %s249 = sand.u32 %s32, 1
        %s250 = smul.addr %s249, 8
        %s251 = scalar_lea.vmem [#allocation2], %s250
        // Predicated region
        $region41: #{tpu_custom_call.1} parent=39 // pred_check
          %p252 = pneg %p45
        $region42: #{tpu_custom_call.1} parent=39 // pred_check_branch
          %254 = sbr.rel (%p252) target = $region44
        $region43: #{tpu_custom_call.1} parent=39 // pred_region
          %255 = dma.done %s248, 128
        $region44: #{tpu_custom_call.1} parent=39 // pred_fallthru
          _
        // Predicated region
        $region45: #{tpu_custom_call.1} parent=39 // pred_check
          %p256 = pneg %p66
        $region46: #{tpu_custom_call.1} parent=39 // pred_check_branch
          %258 = sbr.rel (%p256) target = $region48
        $region47: #{tpu_custom_call.1} parent=39 // pred_region
          %259 = dma.done [#allocation6], 4096
        $region48: #{tpu_custom_call.1} parent=39 // pred_fallthru
          _
        // Predicated region
        $region49: #{tpu_custom_call.1} parent=39 // pred_check
          %p260 = pneg %p87
        $region50: #{tpu_custom_call.1} parent=39 // pred_check_branch
          %262 = sbr.rel (%p260) target = $region52
        $region51: #{tpu_custom_call.1} parent=39 // pred_region
          %263 = dma.done [#allocation6], 32
        $region52: #{tpu_custom_call.1} parent=39 // pred_fallthru
          _
        // Predicated region
        $region53: #{tpu_custom_call.1} parent=39 // pred_check
          %p264 = pneg %p108
        $region54: #{tpu_custom_call.1} parent=39 // pred_check_branch
          %266 = sbr.rel (%p264) target = $region56
        $region55: #{tpu_custom_call.1} parent=39 // pred_region
          %267 = dma.done [#allocation9], 4096
        $region56: #{tpu_custom_call.1} parent=39 // pred_fallthru
          _
        // Predicated region
        $region57: #{tpu_custom_call.1} parent=39 // pred_check
          %p268 = pneg %p129
        $region58: #{tpu_custom_call.1} parent=39 // pred_check_branch
          %270 = sbr.rel (%p268) target = $region60
        $region59: #{tpu_custom_call.1} parent=39 // pred_region
          %271 = dma.done [#allocation9], 16
        $region60: #{tpu_custom_call.1} parent=39 // pred_fallthru
          _
        %s272 = sand.u32 %s32, 1
        %s273 = scalar_lea.sflag [#allocation3], %s272
        %s274 = sand.u32 %s32, 1
        %s275 = smul.addr %s274, 8
        %s276 = scalar_lea.vmem [#allocation2], %s275
        %p277 = pneg %p45
        %p278 = pneg %p42
        %p279 = pneg %p66
        %p280 = pneg %p63
        %p281 = pneg %p87
        %p282 = pneg %p84
        %p283 = pneg %p108
        %p284 = pneg %p105
        %p285 = pneg %p129
        %p286 = pneg %p126
        %p287 = pneg %p155
        %p288 = pneg %p152
        %s289 = sand.u32 %s142, 1
        %s290 = scalar_lea.sflag [#allocation4], %s289
        %s291 = sand.u32 %s142, 1
        %s292 = smul.addr %s291, 8
        %s293 = scalar_lea.vmem [#allocation11], %s292
        %v294 = vld [vmem:[%s251] sm:$0xff]
        %v295 = vld [vmem:[#allocation5] sm:$0xff]
        %v296 = vld [vmem:[#allocation5 + $0x8] sm:$0xff]
        %v297 = vld [vmem:[#allocation5 + $0x10] sm:$0xff]
        %v298 = vld [vmem:[#allocation5 + $0x18] sm:$0xff]
        %v299 = vld [vmem:[#allocation5 + $0x20] sm:$0xff]
        %v300 = vld [vmem:[#allocation5 + $0x28] sm:$0xff]
        %v301 = vld [vmem:[#allocation5 + $0x30] sm:$0xff]
        %v302 = vld [vmem:[#allocation5 + $0x38] sm:$0xff]
        %v303 = vld [vmem:[#allocation5 + $0x40] sm:$0xff]
        %v304 = vld [vmem:[#allocation5 + $0x48] sm:$0xff]
        %v305 = vld [vmem:[#allocation5 + $0x50] sm:$0xff]
        %v306 = vld [vmem:[#allocation5 + $0x58] sm:$0xff]
        %v307 = vld [vmem:[#allocation5 + $0x60] sm:$0xff]
        %v308 = vld [vmem:[#allocation5 + $0x68] sm:$0xff]
        %v309 = vld [vmem:[#allocation5 + $0x70] sm:$0xff]
        %v310 = vld [vmem:[#allocation5 + $0x78] sm:$0xff]
        %v311 = vld [vmem:[#allocation5 + $0x80] sm:$0xff]
        %v312 = vld [vmem:[#allocation5 + $0x88] sm:$0xff]
        %v313 = vld [vmem:[#allocation5 + $0x90] sm:$0xff]
        %v314 = vld [vmem:[#allocation5 + $0x98] sm:$0xff]
        %v315 = vld [vmem:[#allocation5 + $0xa0] sm:$0xff]
        %v316 = vld [vmem:[#allocation5 + $0xa8] sm:$0xff]
        %v317 = vld [vmem:[#allocation5 + $0xb0] sm:$0xff]
        %v318 = vld [vmem:[#allocation5 + $0xb8] sm:$0xff]
        %v319 = vld [vmem:[#allocation5 + $0xc0] sm:$0xff]
        %v320 = vld [vmem:[#allocation5 + $0xc8] sm:$0xff]
        %v321 = vld [vmem:[#allocation5 + $0xd0] sm:$0xff]
        %v322 = vld [vmem:[#allocation5 + $0xd8] sm:$0xff]
        %v323 = vld [vmem:[#allocation5 + $0xe0] sm:$0xff]
        %v324 = vld [vmem:[#allocation5 + $0xe8] sm:$0xff]
        %v325 = vld [vmem:[#allocation5 + $0xf0] sm:$0xff]
        %v326 = vld [vmem:[#allocation5 + $0xf8] sm:$0xff]
        %v327 = vld [vmem:[#allocation7] sm:$0x3]
        %v329 = vlaneseq
        %v330 = vshrl.u32 %v329, 7
        %v331 = vsub.s32 0, %v330
        %v332 = vrot.slane %v327, %v331
        %v333 = vlaneseq
        %v334 = vshrl.u32 %v333, 7
        %v335 = vsub.s32 1, %v334
        %v336 = vrot.slane %v327, %v335
        %339 = vmatprep.subr.mxu0 %v296
        %340 = vmatpush1.msra.mxu0 %v295
        %341 = vmatprep.subr.mxu0 %v298
        %342 = vmatpush1.msra.mxu0 %v297
        %343 = vmatprep.subr.mxu0 %v300
        %344 = vmatpush1.msra.mxu0 %v299
        %345 = vmatprep.subr.mxu0 %v302
        %346 = vmatpush1.msra.mxu0 %v301
        %347 = vmatprep.subr.mxu0 %v304
        %348 = vmatpush1.msra.mxu0 %v303
        %349 = vmatprep.subr.mxu0 %v306
        %350 = vmatpush1.msra.mxu0 %v305
        %351 = vmatprep.subr.mxu0 %v308
        %352 = vmatpush1.msra.mxu0 %v307
        %353 = vmatprep.subr.mxu0 %v310
        %354 = vmatpush1.msra.mxu0 %v309
        %355 = vmatprep.subr.mxu0 %v312
        %356 = vmatpush1.msra.mxu0 %v311
        %357 = vmatprep.subr.mxu0 %v314
        %358 = vmatpush1.msra.mxu0 %v313
        %359 = vmatprep.subr.mxu0 %v316
        %360 = vmatpush1.msra.mxu0 %v315
        %361 = vmatprep.subr.mxu0 %v318
        %362 = vmatpush1.msra.mxu0 %v317
        %363 = vmatprep.subr.mxu0 %v320
        %364 = vmatpush1.msra.mxu0 %v319
        %365 = vmatprep.subr.mxu0 %v322
        %366 = vmatpush1.msra.mxu0 %v321
        %367 = vmatprep.subr.mxu0 %v324
        %368 = vmatpush1.msra.mxu0 %v323
        %369 = vmatprep.subr.mxu0 %v326
        %370 = vmatpush1.msra.mxu0 %v325
        %371 = vmatprep.subr.mxu0 0.0
        %372 = vmatpush1.msra.mxu0 0.0
        %373 = vmatprep.subr.mxu0 0.0
        %374 = vmatpush1.msra.mxu0 0.0
        %375 = vmatprep.subr.mxu0 0.0
        %376 = vmatpush1.msra.mxu0 0.0
        %377 = vmatprep.subr.mxu0 0.0
        %378 = vmatpush1.msra.mxu0 0.0
        %379 = vmatprep.subr.mxu0 0.0
        %380 = vmatpush1.msra.mxu0 0.0
        %381 = vmatprep.subr.mxu0 0.0
        %382 = vmatpush1.msra.mxu0 0.0
        %383 = vmatprep.subr.mxu0 0.0
        %384 = vmatpush1.msra.mxu0 0.0
        %385 = vmatprep.subr.mxu0 0.0
        %386 = vmatpush1.msra.mxu0 0.0
        %387 = vmatprep.subr.mxu0 0.0
        %388 = vmatpush1.msra.mxu0 0.0
        %389 = vmatprep.subr.mxu0 0.0
        %390 = vmatpush1.msra.mxu0 0.0
        %391 = vmatprep.subr.mxu0 0.0
        %392 = vmatpush1.msra.mxu0 0.0
        %393 = vmatprep.subr.mxu0 0.0
        %394 = vmatpush1.msra.mxu0 0.0
        %395 = vmatprep.subr.mxu0 0.0
        %396 = vmatpush1.msra.mxu0 0.0
        %397 = vmatprep.subr.mxu0 0.0
        %398 = vmatpush1.msra.mxu0 0.0
        %399 = vmatprep.subr.mxu0 0.0
        %400 = vmatpush1.msra.mxu0 0.0
        %401 = vmatprep.subr.mxu0 0.0
        %402 = vmatpush1.msra.mxu0 0.0
        %403 = vmatprep.mubr.f32.mxu0 0.0
        %404 = vmatmul.mubr.f32.gmra.mrb[0].mxu0 %v294
        %v405 = vpop.f32.mrb[0].mxu0
        %v406 = vadd.f32 %v332, %v405
        %v407 = vpop.f32.mrb[0].mxu0
        %v408 = vadd.f32 %v336, %v407
        %409 = vdwg.mxu0
        %v410 = vmax.f32 %v406, 0.0
        %v411 = vmax.f32 %v408, 0.0
        %v412 = vld [vmem:[#allocation8] sm:$0xff]
        %v413 = vld [vmem:[#allocation8 + $0x8] sm:$0xff]
        %v414 = vld [vmem:[#allocation8 + $0x10] sm:$0xff]
        %v415 = vld [vmem:[#allocation8 + $0x18] sm:$0xff]
        %v416 = vld [vmem:[#allocation8 + $0x20] sm:$0xff]
        %v417 = vld [vmem:[#allocation8 + $0x28] sm:$0xff]
        %v418 = vld [vmem:[#allocation8 + $0x30] sm:$0xff]
        %v419 = vld [vmem:[#allocation8 + $0x38] sm:$0xff]
        %v420 = vld [vmem:[#allocation8 + $0x40] sm:$0xff]
        %v421 = vld [vmem:[#allocation8 + $0x48] sm:$0xff]
        %v422 = vld [vmem:[#allocation8 + $0x50] sm:$0xff]
        %v423 = vld [vmem:[#allocation8 + $0x58] sm:$0xff]
        %v424 = vld [vmem:[#allocation8 + $0x60] sm:$0xff]
        %v425 = vld [vmem:[#allocation8 + $0x68] sm:$0xff]
        %v426 = vld [vmem:[#allocation8 + $0x70] sm:$0xff]
        %v427 = vld [vmem:[#allocation8 + $0x78] sm:$0xff]
        %v428 = vld [vmem:[#allocation8 + $0x80] sm:$0xff]
        %v429 = vld [vmem:[#allocation8 + $0x88] sm:$0xff]
        %v430 = vld [vmem:[#allocation8 + $0x90] sm:$0xff]
        %v431 = vld [vmem:[#allocation8 + $0x98] sm:$0xff]
        %v432 = vld [vmem:[#allocation8 + $0xa0] sm:$0xff]
        %v433 = vld [vmem:[#allocation8 + $0xa8] sm:$0xff]
        %v434 = vld [vmem:[#allocation8 + $0xb0] sm:$0xff]
        %v435 = vld [vmem:[#allocation8 + $0xb8] sm:$0xff]
        %v436 = vld [vmem:[#allocation8 + $0xc0] sm:$0xff]
        %v437 = vld [vmem:[#allocation8 + $0xc8] sm:$0xff]
        %v438 = vld [vmem:[#allocation8 + $0xd0] sm:$0xff]
        %v439 = vld [vmem:[#allocation8 + $0xd8] sm:$0xff]
        %v440 = vld [vmem:[#allocation8 + $0xe0] sm:$0xff]
        %v441 = vld [vmem:[#allocation8 + $0xe8] sm:$0xff]
        %v442 = vld [vmem:[#allocation8 + $0xf0] sm:$0xff]
        %v443 = vld [vmem:[#allocation8 + $0xf8] sm:$0xff]
        %v444 = vld [vmem:[#allocation10] sm:$0x1]
        %v446 = vlaneseq
        %v447 = vshrl.u32 %v446, 7
        %v448 = vsub.s32 0, %v447
        %v449 = vrot.slane %v444, %v448
        %451 = vmatprep.subr.mxu0 0.0
        %452 = vmatpush1.msra.mxu0 %v412
        %453 = vmatprep.subr.mxu0 0.0
        %454 = vmatpush1.msra.mxu0 %v413
        %455 = vmatprep.subr.mxu0 0.0
        %456 = vmatpush1.msra.mxu0 %v414
        %457 = vmatprep.subr.mxu0 0.0
        %458 = vmatpush1.msra.mxu0 %v415
        %459 = vmatprep.subr.mxu0 0.0
        %460 = vmatpush1.msra.mxu0 %v416
        %461 = vmatprep.subr.mxu0 0.0
        %462 = vmatpush1.msra.mxu0 %v417
        %463 = vmatprep.subr.mxu0 0.0
        %464 = vmatpush1.msra.mxu0 %v418
        %465 = vmatprep.subr.mxu0 0.0
        %466 = vmatpush1.msra.mxu0 %v419
        %467 = vmatprep.subr.mxu0 0.0
        %468 = vmatpush1.msra.mxu0 %v420
        %469 = vmatprep.subr.mxu0 0.0
        %470 = vmatpush1.msra.mxu0 %v421
        %471 = vmatprep.subr.mxu0 0.0
        %472 = vmatpush1.msra.mxu0 %v422
        %473 = vmatprep.subr.mxu0 0.0
        %474 = vmatpush1.msra.mxu0 %v423
        %475 = vmatprep.subr.mxu0 0.0
        %476 = vmatpush1.msra.mxu0 %v424
        %477 = vmatprep.subr.mxu0 0.0
        %478 = vmatpush1.msra.mxu0 %v425
        %479 = vmatprep.subr.mxu0 0.0
        %480 = vmatpush1.msra.mxu0 %v426
        %481 = vmatprep.subr.mxu0 0.0
        %482 = vmatpush1.msra.mxu0 %v427
        %483 = vmatprep.subr.mxu0 0.0
        %484 = vmatpush1.msra.mxu0 %v428
        %485 = vmatprep.subr.mxu0 0.0
        %486 = vmatpush1.msra.mxu0 %v429
        %487 = vmatprep.subr.mxu0 0.0
        %488 = vmatpush1.msra.mxu0 %v430
        %489 = vmatprep.subr.mxu0 0.0
        %490 = vmatpush1.msra.mxu0 %v431
        %491 = vmatprep.subr.mxu0 0.0
        %492 = vmatpush1.msra.mxu0 %v432
        %493 = vmatprep.subr.mxu0 0.0
        %494 = vmatpush1.msra.mxu0 %v433
        %495 = vmatprep.subr.mxu0 0.0
        %496 = vmatpush1.msra.mxu0 %v434
        %497 = vmatprep.subr.mxu0 0.0
        %498 = vmatpush1.msra.mxu0 %v435
        %499 = vmatprep.subr.mxu0 0.0
        %500 = vmatpush1.msra.mxu0 %v436
        %501 = vmatprep.subr.mxu0 0.0
        %502 = vmatpush1.msra.mxu0 %v437
        %503 = vmatprep.subr.mxu0 0.0
        %504 = vmatpush1.msra.mxu0 %v438
        %505 = vmatprep.subr.mxu0 0.0
        %506 = vmatpush1.msra.mxu0 %v439
        %507 = vmatprep.subr.mxu0 0.0
        %508 = vmatpush1.msra.mxu0 %v440
        %509 = vmatprep.subr.mxu0 0.0
        %510 = vmatpush1.msra.mxu0 %v441
        %511 = vmatprep.subr.mxu0 0.0
        %512 = vmatpush1.msra.mxu0 %v442
        %513 = vmatprep.subr.mxu0 0.0
        %514 = vmatpush1.msra.mxu0 %v443
        %515 = vmatprep.mubr.f32.mxu0 %v411
        %516 = vmatmul.mubr.f32.gmra.mrb[0].mxu0 %v410
        %v517 = vpop.f32.mrb[0].mxu0
        %v518 = vadd.f32 %v449, %v517
        %v519 = vpop.f32.mrb[0].mxu0
        %520 = vdwg.mxu0
        %v521 = vadd.f32 %v518, %v294
        %522 = vst [vmem:[%s293] sm:$0xff] %v521
        %s523 = sand.u32 %s142, 1
        %s524 = scalar_lea.sflag [#allocation4], %s523
        %s525 = sand.u32 %s142, 1
        %s526 = smul.addr %s525, 8
        %s527 = scalar_lea.vmem [#allocation11], %s526
        // Predicated region
        $region61: #{tpu_custom_call.1} parent=39 // pred_check
          %p528 = pneg %p152
        $region62: #{tpu_custom_call.1} parent=39 // pred_check_branch
          %530 = sbr.rel (%p528) target = $region64
        $region63: #{tpu_custom_call.1} parent=39 // pred_region
          %s532 = ssub.s32 128, 128
          %533 = vsyncadd %s524, %s532
          %s534 = smul.addr %s24, 128
          %s535 = scalar_lea.hbm %s5, %s534
          %s537 = sshll.u32 %s527, 4
          %s538 = int_to_ptr.vmem [resolvable:$true] %s537
          %540 = dma.vmem_to_hbm [thread:$0]  %s538, 128, %s535, %s524
        $region64: #{tpu_custom_call.1} parent=39 // pred_fallthru
          _
      $region40: #{tpu_custom_call.1} parent=5 // pred_fallthru
        _
      %p541 = scmp.le.s32.totalorder 2, %s19
      // Predicated region
      $region65: #{tpu_custom_call.1} parent=5 // pred_check
        %p542 = pneg %p541
      $region66: #{tpu_custom_call.1} parent=5 // pred_check_branch
        %544 = sbr.rel (%p542) target = $region68
      $region67: #{tpu_custom_call.1} parent=5 // pred_region
        %s545 = ssub.s32 %s19, 2
        // Predicated region
        $region69: #{tpu_custom_call.1} parent=67 // pred_check
          %p546 = pneg %p158
        $region70: #{tpu_custom_call.1} parent=67 // pred_check_branch
          %548 = sbr.rel (%p546) target = $region72
        $region71: #{tpu_custom_call.1} parent=67 // pred_region
          %s549 = sand.u32 %s143, 1
          %s550 = scalar_lea.sflag [#allocation4], %s549
          %s551 = sand.u32 %s143, 1
          %s552 = smul.addr %s551, 8
          %s553 = scalar_lea.vmem [#allocation11], %s552
          %554 = dma.done %s550, 128
        $region72: #{tpu_custom_call.1} parent=67 // pred_fallthru
          _
      $region68: #{tpu_custom_call.1} parent=5 // pred_fallthru
        _
    $region6: #{tpu_custom_call.1} parent=1 // loop_footer
      %s23 = sadd.s32 1, %s19
    $region7: #{tpu_custom_call.1} parent=1 // loop_footer_branch
      %18 = sbr.rel target = $region3
    $region8: #{tpu_custom_call.1} parent=1 // loop_exit
      _
    %555 = vsyncpa [#allocation3], 1
    %s556 = scalar_lea.sflag [#allocation3], 1
    %557 = vsyncpa %s556, 1
    %558 = vsyncpa [#allocation6], 1
    %559 = vsyncpa [#allocation9], 1
    %560 = vsyncpa [#allocation4], 1
    %s561 = scalar_lea.sflag [#allocation4], 1
    %562 = vsyncpa %s561, 1

</llo_original>
